<compile_context>
chip_gen: v5e
topology: v5e:2x2
jax: 0.10.0
libtpu: 0.0.40
codegen_flags: <defaults>
</compile_context>

<pallas_src>
import jax
import jax.numpy as jnp
from jax.experimental import pallas as pl
from jax.experimental.pallas import tpu as pltpu


def _round_up(n, m):
    return ((n + m - 1) // m) * m


# ----------------------------------------------------------------------------
# Kernel: fused N-layer MLP on one batch tile.  All matmuls hit the MXU with
# f32 accumulation; bias-add / ReLU are f32 VPU elementwise ops.
# Activation layout inside the kernel: (features, TILE_B)  -> batch on lanes.
# ----------------------------------------------------------------------------
def _make_encoder_client_kernel(num_layers, use_relu):
    def kernel(x_ref, *refs):
        o_ref = refs[-1]
        wb = refs[:-1]                                  # (w0, b0, w1, b1, ...)
        h = x_ref[...]                                  # (in_pad, TILE_B) bf16
        for li in range(num_layers):
            w_ref, b_ref = wb[2 * li], wb[2 * li + 1]
            # (out, in) @ (in, TILE_B) -> (out, TILE_B), f32 accumulate on MXU.
            a = jnp.dot(w_ref[...], h, preferred_element_type=jnp.float32)
            a = a + b_ref[...]                          # (out, 1) bcast over lanes
            if use_relu:
                a = jnp.maximum(a, 0.0)
            # Feed the next MXU matmul at its native input dtype (bf16);
            # keep the final activation in f32.
            h = a if li == num_layers - 1 else a.astype(x_ref.dtype)
        o_ref[...] = h.astype(o_ref.dtype)
    return kernel


def encoder_client_forward(x, params, act_type='relu',
                           compute_dtype=jnp.bfloat16, max_tile_b=512):
    """Pallas forward pass of encoder_client.

    x:       (B, in_dim) float32
    params:  list of (W, b) in PyTorch layout: W (out, in), b (out,)
    """
    use_relu = (act_type.lower() == 'relu')
    num_layers = len(params)

    B, in_dim = x.shape
    out_dim = int(params[-1][0].shape[0])

    # Tile / padding choices: batch padded to a multiple of the (128-aligned)
    # tile; layer-0 contraction dim padded to a multiple of 8.
    tile_b = min(max_tile_b, _round_up(B, 128))
    b_pad = _round_up(B, tile_b)
    in_pad = _round_up(in_dim, 8)

    # Transpose once in the wrapper: batch -> lane axis.
    x_t = jnp.pad(x, ((0, b_pad - B), (0, in_pad - in_dim))).T   # (in_pad, b_pad)
    x_t = x_t.astype(compute_dtype)

    flat_args = [x_t]
    in_specs = [pl.BlockSpec((in_pad, tile_b), lambda i: (0, i))]
    for li, (w, b) in enumerate(params):
        if li == 0 and in_pad != in_dim:
            w = jnp.pad(w, ((0, 0), (0, in_pad - in_dim)))       # zero cols: no-op
        w = w.astype(compute_dtype)                              # (out, in)
        b2 = b.reshape(-1, 1).astype(jnp.float32)                # (out, 1)
        flat_args += [w, b2]
        # Constant block index => weights/biases stay resident in VMEM.
        in_specs += [pl.BlockSpec(tuple(w.shape), lambda i: (0, 0)),
                     pl.BlockSpec(tuple(b2.shape), lambda i: (0, 0))]

    kernel = _make_encoder_client_kernel(num_layers, use_relu)

    itemsize = jnp.dtype(compute_dtype).itemsize
    flops = 2 * b_pad * sum(int(w.shape[0]) * int(w.shape[1]) for w, _ in params)
    bytes_accessed = (x_t.size * itemsize
                      + b_pad * out_dim * 4
                      + sum(int(w.size) * itemsize + int(b.size) * 4
                            for w, b in params))

    out_t = pl.pallas_call(
        kernel,
        out_shape=jax.ShapeDtypeStruct((out_dim, b_pad), jnp.float32),
        grid=(b_pad // tile_b,),
        in_specs=in_specs,
        out_specs=pl.BlockSpec((out_dim, tile_b), lambda i: (0, i)),
        compiler_params=pltpu.CompilerParams(
            dimension_semantics=("parallel",)),
        cost_estimate=pl.CostEstimate(flops=flops, transcendentals=0,
                                      bytes_accessed=bytes_accessed),
    )(*flat_args)

    # Back to the PyTorch (B, out_dim) layout, dropping batch padding.
    return out_t[:, :B].T


# ----------------------------------------------------------------------------
# Deterministic parameter init (mirrors nn.Linear's uniform(-1/sqrt(in), +)).
# Weights are stored in PyTorch layout (out, in).
# ----------------------------------------------------------------------------
def init_encoder_client_params(key, enc_client_dims):
    params = []
    for (fan_in, fan_out) in enc_client_dims:
        key, kw, kb = jax.random.split(key, 3)
        bound = 1.0 / jnp.sqrt(fan_in)
        w = jax.random.uniform(kw, (fan_out, fan_in), jnp.float32,
                               minval=-bound, maxval=bound)
        b = jax.random.uniform(kb, (fan_out,), jnp.float32,
                               minval=-bound, maxval=bound)
        params.append((w, b))
    return params


# Pure-JAX reference (mirrors the kernel's bf16 input/weight quantization and
# inter-layer recast, with true-f32 matmuls).
def _reference_forward(x, params, act_type='relu', compute_dtype=jnp.bfloat16):
    f32 = jnp.float32
    h = x.astype(compute_dtype).astype(f32)
    n = len(params)
    for i, (w, b) in enumerate(params):
        wq = w.astype(compute_dtype).astype(f32)
        a = jnp.dot(h, wq.T, precision=jax.lax.Precision.HIGHEST) + b
        if act_type.lower() == 'relu':
            a = jnp.maximum(a, 0.0)
        h = a if i == n - 1 else a.astype(compute_dtype).astype(f32)
    return h


if __name__ == "__main__":
    # Matches the docstring example: enc_client_dims=[[10,16],[16,32],[32,32],[32,16]],
    # layer_num=4, act_type='relu'.
    enc_client_dims = [[10, 16], [16, 32], [32, 32], [32, 16]]
    act_type = 'relu'

    key = jax.random.PRNGKey(0)
    kx, kp = jax.random.split(key)

    batch = 520          # exercises batch padding (-> 1024) and a 2-step grid
    x = jax.random.normal(kx, (batch, enc_client_dims[0][0]), jnp.float32)
    params = init_encoder_client_params(kp, enc_client_dims)

    out = encoder_client_forward(x, params, act_type=act_type)
    out = jax.block_until_ready(out)

    ref = _reference_forward(x, params, act_type=act_type)
    assert out.shape == (batch, enc_client_dims[-1][1])
    assert jnp.allclose(out, ref, atol=1e-4, rtol=1e-4), \
        float(jnp.max(jnp.abs(out - ref)))

    print("KERNEL_OK")
</pallas_src>

<mosaic_0001>
module attributes {stable_mosaic.version = 11 : i64} {
  func.func @kernel(%arg0: i32, %arg1: memref<16x512xbf16, #tpu.memory_space<vmem>>, %arg2: memref<16x16xbf16, #tpu.memory_space<vmem>>, %arg3: memref<16x1xf32, #tpu.memory_space<vmem>>, %arg4: memref<32x16xbf16, #tpu.memory_space<vmem>>, %arg5: memref<32x1xf32, #tpu.memory_space<vmem>>, %arg6: memref<32x32xbf16, #tpu.memory_space<vmem>>, %arg7: memref<32x1xf32, #tpu.memory_space<vmem>>, %arg8: memref<16x32xbf16, #tpu.memory_space<vmem>>, %arg9: memref<16x1xf32, #tpu.memory_space<vmem>>, %arg10: memref<16x512xf32, #tpu.memory_space<vmem>>) attributes {dimension_semantics = [#tpu.dimension_semantics<parallel>], iteration_bounds = array<i64: 2>, scalar_prefetch = 0 : i64, scratch_operands = 0 : i64, tpu.core_type = #tpu.core_type<tc>, window_params = [{transform_indices = @transform_0, window_bounds = array<i64: 16, 512>}, {pipeline_mode = #tpu.pipeline_mode<synchronous>, transform_indices = @transform_1, window_bounds = array<i64: 16, 16>}, {pipeline_mode = #tpu.pipeline_mode<synchronous>, transform_indices = @transform_2, window_bounds = array<i64: 16, 1>}, {pipeline_mode = #tpu.pipeline_mode<synchronous>, transform_indices = @transform_3, window_bounds = array<i64: 32, 16>}, {pipeline_mode = #tpu.pipeline_mode<synchronous>, transform_indices = @transform_4, window_bounds = array<i64: 32, 1>}, {pipeline_mode = #tpu.pipeline_mode<synchronous>, transform_indices = @transform_5, window_bounds = array<i64: 32, 32>}, {pipeline_mode = #tpu.pipeline_mode<synchronous>, transform_indices = @transform_6, window_bounds = array<i64: 32, 1>}, {pipeline_mode = #tpu.pipeline_mode<synchronous>, transform_indices = @transform_7, window_bounds = array<i64: 16, 32>}, {pipeline_mode = #tpu.pipeline_mode<synchronous>, transform_indices = @transform_8, window_bounds = array<i64: 16, 1>}, {transform_indices = @transform_9, window_bounds = array<i64: 16, 512>}]} {
    %c0 = arith.constant 0 : index
    %c0_0 = arith.constant 0 : index
    %0 = vector.load %arg1[%c0, %c0_0] : memref<16x512xbf16, #tpu.memory_space<vmem>>, vector<16x512xbf16>
    %c0_1 = arith.constant 0 : index
    %c0_2 = arith.constant 0 : index
    %1 = vector.load %arg2[%c0_1, %c0_2] : memref<16x16xbf16, #tpu.memory_space<vmem>>, vector<16x16xbf16>
    %cst = arith.constant dense<0.000000e+00> : vector<16x512xf32>
    %2 = tpu.matmul %1, %0, %cst {dimension_numbers = #tpu.dot_dimension_numbers<[1], [0], [0], [1], [0, 0, 1, 1], [], []>} : vector<16x16xbf16>, vector<16x512xbf16>, vector<16x512xf32> -> vector<16x512xf32>
    %c0_3 = arith.constant 0 : index
    %c0_4 = arith.constant 0 : index
    %3 = vector.load %arg3[%c0_3, %c0_4] : memref<16x1xf32, #tpu.memory_space<vmem>>, vector<16x1xf32>
    %4 = vector.broadcast %3 : vector<16x1xf32> to vector<16x512xf32>
    %5 = arith.addf %2, %4 : vector<16x512xf32>
    %cst_5 = arith.constant 0.000000e+00 : f32
    %6 = vector.broadcast %cst_5 : f32 to vector<16x512xf32>
    %7 = arith.maximumf %5, %6 : vector<16x512xf32>
    %8 = arith.truncf %7 : vector<16x512xf32> to vector<16x512xbf16>
    %c0_6 = arith.constant 0 : index
    %c0_7 = arith.constant 0 : index
    %9 = vector.load %arg4[%c0_6, %c0_7] : memref<32x16xbf16, #tpu.memory_space<vmem>>, vector<32x16xbf16>
    %cst_8 = arith.constant dense<0.000000e+00> : vector<32x512xf32>
    %10 = tpu.matmul %9, %8, %cst_8 {dimension_numbers = #tpu.dot_dimension_numbers<[1], [0], [0], [1], [0, 0, 1, 1], [], []>} : vector<32x16xbf16>, vector<16x512xbf16>, vector<32x512xf32> -> vector<32x512xf32>
    %c0_9 = arith.constant 0 : index
    %c0_10 = arith.constant 0 : index
    %11 = vector.load %arg5[%c0_9, %c0_10] : memref<32x1xf32, #tpu.memory_space<vmem>>, vector<32x1xf32>
    %12 = vector.broadcast %11 : vector<32x1xf32> to vector<32x512xf32>
    %13 = arith.addf %10, %12 : vector<32x512xf32>
    %cst_11 = arith.constant 0.000000e+00 : f32
    %14 = vector.broadcast %cst_11 : f32 to vector<32x512xf32>
    %15 = arith.maximumf %13, %14 : vector<32x512xf32>
    %16 = arith.truncf %15 : vector<32x512xf32> to vector<32x512xbf16>
    %c0_12 = arith.constant 0 : index
    %c0_13 = arith.constant 0 : index
    %17 = vector.load %arg6[%c0_12, %c0_13] : memref<32x32xbf16, #tpu.memory_space<vmem>>, vector<32x32xbf16>
    %cst_14 = arith.constant dense<0.000000e+00> : vector<32x512xf32>
    %18 = tpu.matmul %17, %16, %cst_14 {dimension_numbers = #tpu.dot_dimension_numbers<[1], [0], [0], [1], [0, 0, 1, 1], [], []>} : vector<32x32xbf16>, vector<32x512xbf16>, vector<32x512xf32> -> vector<32x512xf32>
    %c0_15 = arith.constant 0 : index
    %c0_16 = arith.constant 0 : index
    %19 = vector.load %arg7[%c0_15, %c0_16] : memref<32x1xf32, #tpu.memory_space<vmem>>, vector<32x1xf32>
    %20 = vector.broadcast %19 : vector<32x1xf32> to vector<32x512xf32>
    %21 = arith.addf %18, %20 : vector<32x512xf32>
    %cst_17 = arith.constant 0.000000e+00 : f32
    %22 = vector.broadcast %cst_17 : f32 to vector<32x512xf32>
    %23 = arith.maximumf %21, %22 : vector<32x512xf32>
    %24 = arith.truncf %23 : vector<32x512xf32> to vector<32x512xbf16>
    %c0_18 = arith.constant 0 : index
    %c0_19 = arith.constant 0 : index
    %25 = vector.load %arg8[%c0_18, %c0_19] : memref<16x32xbf16, #tpu.memory_space<vmem>>, vector<16x32xbf16>
    %cst_20 = arith.constant dense<0.000000e+00> : vector<16x512xf32>
    %26 = tpu.matmul %25, %24, %cst_20 {dimension_numbers = #tpu.dot_dimension_numbers<[1], [0], [0], [1], [0, 0, 1, 1], [], []>} : vector<16x32xbf16>, vector<32x512xbf16>, vector<16x512xf32> -> vector<16x512xf32>
    %c0_21 = arith.constant 0 : index
    %c0_22 = arith.constant 0 : index
    %27 = vector.load %arg9[%c0_21, %c0_22] : memref<16x1xf32, #tpu.memory_space<vmem>>, vector<16x1xf32>
    %28 = vector.broadcast %27 : vector<16x1xf32> to vector<16x512xf32>
    %29 = arith.addf %26, %28 : vector<16x512xf32>
    %cst_23 = arith.constant 0.000000e+00 : f32
    %30 = vector.broadcast %cst_23 : f32 to vector<16x512xf32>
    %31 = arith.maximumf %29, %30 : vector<16x512xf32>
    %c0_24 = arith.constant 0 : index
    %c0_25 = arith.constant 0 : index
    %32 = vector.load %arg10[%c0_24, %c0_25] : memref<16x512xf32, #tpu.memory_space<vmem>>, vector<16x512xf32>
    tpu.vector_store %arg10[%c0_24, %c0_25], %31 {strides = array<i32>} : memref<16x512xf32, #tpu.memory_space<vmem>>, vector<16x512xf32>,
    return
  }
  func.func @transform_0(%arg0: i32) -> (i32, i32) {
    %c0_i32 = arith.constant 0 : i32
    %c0_i32_0 = arith.constant 0 : i32
    return %c0_i32, %arg0 : i32, i32
  }
  func.func @transform_1(%arg0: i32) -> (i32, i32) {
    %c0_i32 = arith.constant 0 : i32
    %c0_i32_0 = arith.constant 0 : i32
    %c0_i32_1 = arith.constant 0 : i32
    return %c0_i32, %c0_i32_0 : i32, i32
  }
  func.func @transform_2(%arg0: i32) -> (i32, i32) {
    %c0_i32 = arith.constant 0 : i32
    %c0_i32_0 = arith.constant 0 : i32
    %c0_i32_1 = arith.constant 0 : i32
    return %c0_i32, %c0_i32_0 : i32, i32
  }
  func.func @transform_3(%arg0: i32) -> (i32, i32) {
    %c0_i32 = arith.constant 0 : i32
    %c0_i32_0 = arith.constant 0 : i32
    %c0_i32_1 = arith.constant 0 : i32
    return %c0_i32, %c0_i32_0 : i32, i32
  }
  func.func @transform_4(%arg0: i32) -> (i32, i32) {
    %c0_i32 = arith.constant 0 : i32
    %c0_i32_0 = arith.constant 0 : i32
    %c0_i32_1 = arith.constant 0 : i32
    return %c0_i32, %c0_i32_0 : i32, i32
  }
  func.func @transform_5(%arg0: i32) -> (i32, i32) {
    %c0_i32 = arith.constant 0 : i32
    %c0_i32_0 = arith.constant 0 : i32
    %c0_i32_1 = arith.constant 0 : i32
    return %c0_i32, %c0_i32_0 : i32, i32
  }
  func.func @transform_6(%arg0: i32) -> (i32, i32) {
    %c0_i32 = arith.constant 0 : i32
    %c0_i32_0 = arith.constant 0 : i32
    %c0_i32_1 = arith.constant 0 : i32
    return %c0_i32, %c0_i32_0 : i32, i32
  }
  func.func @transform_7(%arg0: i32) -> (i32, i32) {
    %c0_i32 = arith.constant 0 : i32
    %c0_i32_0 = arith.constant 0 : i32
    %c0_i32_1 = arith.constant 0 : i32
    return %c0_i32, %c0_i32_0 : i32, i32
  }
  func.func @transform_8(%arg0: i32) -> (i32, i32) {
    %c0_i32 = arith.constant 0 : i32
    %c0_i32_0 = arith.constant 0 : i32
    %c0_i32_1 = arith.constant 0 : i32
    return %c0_i32, %c0_i32_0 : i32, i32
  }
  func.func @transform_9(%arg0: i32) -> (i32, i32) {
    %c0_i32 = arith.constant 0 : i32
    %c0_i32_0 = arith.constant 0 : i32
    return %c0_i32, %arg0 : i32, i32
  }
}

</mosaic_0001>

<llo_original>
// kernel: tpu_custom_call.1
$region0: #{tpu_custom_call.1}
  #allocation0 [shape = 'u32[]', space=smem, size = 0x4, offset = 0x4, fixed_abs, tag = 'smem constant byte address 0x4 - core index']
  #allocation1 [shape = 'u32[72,128]{1,0:T(1,128)}', space=vmem, size = 0x9000, scoped, tag = 'internal scratch']
  %s0 = inlined_call_operand.vmem [shape: bf16[16,1024], index: 0, kind: input, shape index: {}]
  %s1 = inlined_call_operand.vmem [shape: bf16[16,16], index: 1, kind: input, shape index: {}]
  %s2 = inlined_call_operand.vmem [shape: f32[16,1], index: 2, kind: input, shape index: {}]
  %s3 = inlined_call_operand.vmem [shape: bf16[32,16], index: 3, kind: input, shape index: {}]
  %s4 = inlined_call_operand.vmem [shape: f32[32,1], index: 4, kind: input, shape index: {}]
  %s5 = inlined_call_operand.vmem [shape: bf16[32,32], index: 5, kind: input, shape index: {}]
  %s6 = inlined_call_operand.vmem [shape: f32[32,1], index: 6, kind: input, shape index: {}]
  %s7 = inlined_call_operand.vmem [shape: bf16[16,32], index: 7, kind: input, shape index: {}]
  %s8 = inlined_call_operand.vmem [shape: f32[16,1], index: 8, kind: input, shape index: {}]
  %s9 = inlined_call_operand.hbm [shape: f32[16,1024], index: 9, kind: output, shape index: {}]
  %s10 = sld [smem:[#allocation0]]
  $region92: #{tpu_custom_call.1} parent=0
    _
  %s12 = ssub.s32 1, %s10
  %s13 = scalar_select 0, %s12, %s10
  $region1: #{tpu_custom_call.1} parent=0
    #allocation2 [shape = 'u8[32768]{0}', space=vmem, size = 0x8000, scoped, tag = 'input window, operand 0']
    #allocation3 [shape = 'u8[65536]{0}', space=vmem, size = 0x10000, scoped, tag = 'output window, operand 0']
    #allocation4 [shape = 's32[2]{0}', space=sflag, size = 0x8, scoped, tag = 'scoped memory for tpu_custom_call.1']
    %14 = vsyncpa [#allocation4], 0
    %s15 = scalar_lea.sflag [#allocation4], 1
    %16 = vsyncpa %s15, 0
    loop: start=0, step=1, limit=4
    $region2: #{tpu_custom_call.1} parent=1 // loop_pre_header
      _
    $region3: #{tpu_custom_call.1} parent=1 // loop_header
      %s18 = sphi 0, %s22
      %p19 = scmp.ge.s32.totalorder %s18, 4
      %s28 = sphi 0, %s30
      %s31 = sphi 0, %s28
      %s32 = sphi 0, %s31
      %s48 = sphi 0, %s32
      %s52 = sphi 0, %s52
      %s54 = sphi 0, %s52
      %s55 = sphi 0, %s54
      %s69 = sphi 0, %s55
      %s73 = sphi 0, %s73
      %s75 = sphi 0, %s73
      %s76 = sphi 0, %s75
      %s90 = sphi 0, %s76
      %s94 = sphi 0, %s94
      %s96 = sphi 0, %s94
      %s97 = sphi 0, %s96
      %s111 = sphi 0, %s97
      %s115 = sphi 0, %s115
      %s117 = sphi 0, %s115
      %s118 = sphi 0, %s117
      %s132 = sphi 0, %s118
      %s136 = sphi 0, %s136
      %s138 = sphi 0, %s136
      %s139 = sphi 0, %s138
      %s153 = sphi 0, %s139
      %s157 = sphi 0, %s157
      %s159 = sphi 0, %s157
      %s160 = sphi 0, %s159
      %s174 = sphi 0, %s160
      %s178 = sphi 0, %s178
      %s180 = sphi 0, %s178
      %s181 = sphi 0, %s180
      %s195 = sphi 0, %s181
      %s199 = sphi 0, %s199
      %s201 = sphi 0, %s199
      %s202 = sphi 0, %s201
      %s216 = sphi 0, %s202
      %s222 = sphi 0, %s224
      %s225 = sphi 0, %s222
      %s226 = sphi 0, %s225
      %s242 = sphi 0, %s226
    $region4: #{tpu_custom_call.1} parent=1 // loop_header_branch
      %21 = sbr.rel (%p19) target = $region8
    $region5: #{tpu_custom_call.1} parent=1 // loop_body
      %s23 = ssub.s32 %s18, 1
      %s24 = ssub.s32 %s18, 2
      %s25 = sadd.s32 %s18, 1
      %s26 = ssub.s32 %s18, %s25
      %p27 = scmp.eq.s32.totalorder %s26, 0
      %s29 = sadd.s32 %s28, 1
      %s30 = scalar_select %p27, %s28, %s29
      %p33 = pneg %p27
      %p34 = scmp.eq.s32.totalorder %s18, 1
      %p35 = por %p33, %p34
      %p36 = scmp.ne.s32.totalorder %s28, %s31
      %p37 = scmp.eq.s32.totalorder %s18, 0
      %p38 = por %p36, %p37
      %p39 = scmp.ne.s32.totalorder %s28, %s31
      %p40 = scmp.eq.s32.totalorder %s23, 1
      %p41 = por %p39, %p40
      %p42 = scmp.ne.s32.totalorder %s31, %s32
      %p43 = scmp.eq.s32.totalorder %s23, 0
      %p44 = por %p42, %p43
      %p45 = scmp.ne.s32.totalorder %s31, %s32
      %p46 = scmp.eq.s32.totalorder %s24, 1
      %p47 = por %p45, %p46
      %p49 = scmp.ne.s32.totalorder %s32, %s48
      %p50 = scmp.eq.s32.totalorder %s24, 0
      %p51 = por %p49, %p50
      %s53 = sadd.s32 %s52, 1
      %p56 = scmp.eq.s32.totalorder %s18, 1
      %p57 = scmp.ne.s32.totalorder %s52, %s54
      %p58 = scmp.eq.s32.totalorder %s18, 0
      %p59 = por %p57, %p58
      %p60 = scmp.ne.s32.totalorder %s52, %s54
      %p61 = scmp.eq.s32.totalorder %s23, 1
      %p62 = por %p60, %p61
      %p63 = scmp.ne.s32.totalorder %s54, %s55
      %p64 = scmp.eq.s32.totalorder %s23, 0
      %p65 = por %p63, %p64
      %p66 = scmp.ne.s32.totalorder %s54, %s55
      %p67 = scmp.eq.s32.totalorder %s24, 1
      %p68 = por %p66, %p67
      %p70 = scmp.ne.s32.totalorder %s55, %s69
      %p71 = scmp.eq.s32.totalorder %s24, 0
      %p72 = por %p70, %p71
      %s74 = sadd.s32 %s73, 1
      %p77 = scmp.eq.s32.totalorder %s18, 1
      %p78 = scmp.ne.s32.totalorder %s73, %s75
      %p79 = scmp.eq.s32.totalorder %s18, 0
      %p80 = por %p78, %p79
      %p81 = scmp.ne.s32.totalorder %s73, %s75
      %p82 = scmp.eq.s32.totalorder %s23, 1
      %p83 = por %p81, %p82
      %p84 = scmp.ne.s32.totalorder %s75, %s76
      %p85 = scmp.eq.s32.totalorder %s23, 0
      %p86 = por %p84, %p85
      %p87 = scmp.ne.s32.totalorder %s75, %s76
      %p88 = scmp.eq.s32.totalorder %s24, 1
      %p89 = por %p87, %p88
      %p91 = scmp.ne.s32.totalorder %s76, %s90
      %p92 = scmp.eq.s32.totalorder %s24, 0
      %p93 = por %p91, %p92
      %s95 = sadd.s32 %s94, 1
      %p98 = scmp.eq.s32.totalorder %s18, 1
      %p99 = scmp.ne.s32.totalorder %s94, %s96
      %p100 = scmp.eq.s32.totalorder %s18, 0
      %p101 = por %p99, %p100
      %p102 = scmp.ne.s32.totalorder %s94, %s96
      %p103 = scmp.eq.s32.totalorder %s23, 1
      %p104 = por %p102, %p103
      %p105 = scmp.ne.s32.totalorder %s96, %s97
      %p106 = scmp.eq.s32.totalorder %s23, 0
      %p107 = por %p105, %p106
      %p108 = scmp.ne.s32.totalorder %s96, %s97
      %p109 = scmp.eq.s32.totalorder %s24, 1
      %p110 = por %p108, %p109
      %p112 = scmp.ne.s32.totalorder %s97, %s111
      %p113 = scmp.eq.s32.totalorder %s24, 0
      %p114 = por %p112, %p113
      %s116 = sadd.s32 %s115, 1
      %p119 = scmp.eq.s32.totalorder %s18, 1
      %p120 = scmp.ne.s32.totalorder %s115, %s117
      %p121 = scmp.eq.s32.totalorder %s18, 0
      %p122 = por %p120, %p121
      %p123 = scmp.ne.s32.totalorder %s115, %s117
      %p124 = scmp.eq.s32.totalorder %s23, 1
      %p125 = por %p123, %p124
      %p126 = scmp.ne.s32.totalorder %s117, %s118
      %p127 = scmp.eq.s32.totalorder %s23, 0
      %p128 = por %p126, %p127
      %p129 = scmp.ne.s32.totalorder %s117, %s118
      %p130 = scmp.eq.s32.totalorder %s24, 1
      %p131 = por %p129, %p130
      %p133 = scmp.ne.s32.totalorder %s118, %s132
      %p134 = scmp.eq.s32.totalorder %s24, 0
      %p135 = por %p133, %p134
      %s137 = sadd.s32 %s136, 1
      %p140 = scmp.eq.s32.totalorder %s18, 1
      %p141 = scmp.ne.s32.totalorder %s136, %s138
      %p142 = scmp.eq.s32.totalorder %s18, 0
      %p143 = por %p141, %p142
      %p144 = scmp.ne.s32.totalorder %s136, %s138
      %p145 = scmp.eq.s32.totalorder %s23, 1
      %p146 = por %p144, %p145
      %p147 = scmp.ne.s32.totalorder %s138, %s139
      %p148 = scmp.eq.s32.totalorder %s23, 0
      %p149 = por %p147, %p148
      %p150 = scmp.ne.s32.totalorder %s138, %s139
      %p151 = scmp.eq.s32.totalorder %s24, 1
      %p152 = por %p150, %p151
      %p154 = scmp.ne.s32.totalorder %s139, %s153
      %p155 = scmp.eq.s32.totalorder %s24, 0
      %p156 = por %p154, %p155
      %s158 = sadd.s32 %s157, 1
      %p161 = scmp.eq.s32.totalorder %s18, 1
      %p162 = scmp.ne.s32.totalorder %s157, %s159
      %p163 = scmp.eq.s32.totalorder %s18, 0
      %p164 = por %p162, %p163
      %p165 = scmp.ne.s32.totalorder %s157, %s159
      %p166 = scmp.eq.s32.totalorder %s23, 1
      %p167 = por %p165, %p166
      %p168 = scmp.ne.s32.totalorder %s159, %s160
      %p169 = scmp.eq.s32.totalorder %s23, 0
      %p170 = por %p168, %p169
      %p171 = scmp.ne.s32.totalorder %s159, %s160
      %p172 = scmp.eq.s32.totalorder %s24, 1
      %p173 = por %p171, %p172
      %p175 = scmp.ne.s32.totalorder %s160, %s174
      %p176 = scmp.eq.s32.totalorder %s24, 0
      %p177 = por %p175, %p176
      %s179 = sadd.s32 %s178, 1
      %p182 = scmp.eq.s32.totalorder %s18, 1
      %p183 = scmp.ne.s32.totalorder %s178, %s180
      %p184 = scmp.eq.s32.totalorder %s18, 0
      %p185 = por %p183, %p184
      %p186 = scmp.ne.s32.totalorder %s178, %s180
      %p187 = scmp.eq.s32.totalorder %s23, 1
      %p188 = por %p186, %p187
      %p189 = scmp.ne.s32.totalorder %s180, %s181
      %p190 = scmp.eq.s32.totalorder %s23, 0
      %p191 = por %p189, %p190
      %p192 = scmp.ne.s32.totalorder %s180, %s181
      %p193 = scmp.eq.s32.totalorder %s24, 1
      %p194 = por %p192, %p193
      %p196 = scmp.ne.s32.totalorder %s181, %s195
      %p197 = scmp.eq.s32.totalorder %s24, 0
      %p198 = por %p196, %p197
      %s200 = sadd.s32 %s199, 1
      %p203 = scmp.eq.s32.totalorder %s18, 1
      %p204 = scmp.ne.s32.totalorder %s199, %s201
      %p205 = scmp.eq.s32.totalorder %s18, 0
      %p206 = por %p204, %p205
      %p207 = scmp.ne.s32.totalorder %s199, %s201
      %p208 = scmp.eq.s32.totalorder %s23, 1
      %p209 = por %p207, %p208
      %p210 = scmp.ne.s32.totalorder %s201, %s202
      %p211 = scmp.eq.s32.totalorder %s23, 0
      %p212 = por %p210, %p211
      %p213 = scmp.ne.s32.totalorder %s201, %s202
      %p214 = scmp.eq.s32.totalorder %s24, 1
      %p215 = por %p213, %p214
      %p217 = scmp.ne.s32.totalorder %s202, %s216
      %p218 = scmp.eq.s32.totalorder %s24, 0
      %p219 = por %p217, %p218
      %s220 = ssub.s32 %s18, %s25
      %p221 = scmp.eq.s32.totalorder %s220, 0
      %s223 = sadd.s32 %s222, 1
      %s224 = scalar_select %p221, %s222, %s223
      %p227 = pneg %p221
      %p228 = scmp.eq.s32.totalorder %s18, 1
      %p229 = por %p227, %p228
      %p230 = scmp.ne.s32.totalorder %s222, %s225
      %p231 = scmp.eq.s32.totalorder %s18, 0
      %p232 = por %p230, %p231
      %p233 = scmp.ne.s32.totalorder %s222, %s225
      %p234 = scmp.eq.s32.totalorder %s23, 1
      %p235 = por %p233, %p234
      %p236 = scmp.ne.s32.totalorder %s225, %s226
      %p237 = scmp.eq.s32.totalorder %s23, 0
      %p238 = por %p236, %p237
      %p239 = scmp.ne.s32.totalorder %s225, %s226
      %p240 = scmp.eq.s32.totalorder %s24, 1
      %p241 = por %p239, %p240
      %p243 = scmp.ne.s32.totalorder %s226, %s242
      %p244 = scmp.eq.s32.totalorder %s24, 0
      %p245 = por %p243, %p244
      %p246 = scmp.le.s32.totalorder 1, %s18
      %p247 = scmp.lt.s32.totalorder %s18, 3
      %p248 = pnand %p246, %p247
      %p249 = pneg %p248
      // Predicated region
      $region9: #{tpu_custom_call.1} parent=5 // pred_check
        _
      $region10: #{tpu_custom_call.1} parent=5 // pred_check_branch
        %251 = sbr.rel (%p248) target = $region12
      $region11: #{tpu_custom_call.1} parent=5 // pred_region
        %s252 = ssub.s32 %s18, 1
        // Predicated region
        $region13: #{tpu_custom_call.1} parent=11 // pred_check
          %p253 = pneg %p65
        $region14: #{tpu_custom_call.1} parent=11 // pred_check_branch
          %255 = sbr.rel (%p253) target = $region16
        $region15: #{tpu_custom_call.1} parent=11 // pred_region
          _
        $region16: #{tpu_custom_call.1} parent=11 // pred_fallthru
          _
        // Predicated region
        $region17: #{tpu_custom_call.1} parent=11 // pred_check
          %p256 = pneg %p86
        $region18: #{tpu_custom_call.1} parent=11 // pred_check_branch
          %258 = sbr.rel (%p256) target = $region20
        $region19: #{tpu_custom_call.1} parent=11 // pred_region
          _
        $region20: #{tpu_custom_call.1} parent=11 // pred_fallthru
          _
        // Predicated region
        $region21: #{tpu_custom_call.1} parent=11 // pred_check
          %p259 = pneg %p107
        $region22: #{tpu_custom_call.1} parent=11 // pred_check_branch
          %261 = sbr.rel (%p259) target = $region24
        $region23: #{tpu_custom_call.1} parent=11 // pred_region
          _
        $region24: #{tpu_custom_call.1} parent=11 // pred_fallthru
          _
        // Predicated region
        $region25: #{tpu_custom_call.1} parent=11 // pred_check
          %p262 = pneg %p128
        $region26: #{tpu_custom_call.1} parent=11 // pred_check_branch
          %264 = sbr.rel (%p262) target = $region28
        $region27: #{tpu_custom_call.1} parent=11 // pred_region
          _
        $region28: #{tpu_custom_call.1} parent=11 // pred_fallthru
          _
        // Predicated region
        $region29: #{tpu_custom_call.1} parent=11 // pred_check
          %p265 = pneg %p149
        $region30: #{tpu_custom_call.1} parent=11 // pred_check_branch
          %267 = sbr.rel (%p265) target = $region32
        $region31: #{tpu_custom_call.1} parent=11 // pred_region
          _
        $region32: #{tpu_custom_call.1} parent=11 // pred_fallthru
          _
        // Predicated region
        $region33: #{tpu_custom_call.1} parent=11 // pred_check
          %p268 = pneg %p170
        $region34: #{tpu_custom_call.1} parent=11 // pred_check_branch
          %270 = sbr.rel (%p268) target = $region36
        $region35: #{tpu_custom_call.1} parent=11 // pred_region
          _
        $region36: #{tpu_custom_call.1} parent=11 // pred_fallthru
          _
        // Predicated region
        $region37: #{tpu_custom_call.1} parent=11 // pred_check
          %p271 = pneg %p191
        $region38: #{tpu_custom_call.1} parent=11 // pred_check_branch
          %273 = sbr.rel (%p271) target = $region40
        $region39: #{tpu_custom_call.1} parent=11 // pred_region
          _
        $region40: #{tpu_custom_call.1} parent=11 // pred_fallthru
          _
        // Predicated region
        $region41: #{tpu_custom_call.1} parent=11 // pred_check
          %p274 = pneg %p212
        $region42: #{tpu_custom_call.1} parent=11 // pred_check_branch
          %276 = sbr.rel (%p274) target = $region44
        $region43: #{tpu_custom_call.1} parent=11 // pred_region
          _
        $region44: #{tpu_custom_call.1} parent=11 // pred_fallthru
          _
      $region12: #{tpu_custom_call.1} parent=5 // pred_fallthru
        _
      %p277 = scmp.lt.s32.totalorder %s18, 2
      // Predicated region
      $region45: #{tpu_custom_call.1} parent=5 // pred_check
        %p278 = pneg %p277
      $region46: #{tpu_custom_call.1} parent=5 // pred_check_branch
        %280 = sbr.rel (%p278) target = $region48
      $region47: #{tpu_custom_call.1} parent=5 // pred_region
        // Predicated region
        $region49: #{tpu_custom_call.1} parent=47 // pred_check
          %p281 = pneg %p38
        $region50: #{tpu_custom_call.1} parent=47 // pred_check_branch
          %283 = sbr.rel (%p281) target = $region52
        $region51: #{tpu_custom_call.1} parent=47 // pred_region
          %s284 = sand.u32 %s28, 1
          %s285 = sand.u32 %s28, 1
          %s286 = smul.addr %s285, 32
          %s287 = scalar_lea.vmem [#allocation2], %s286
          %s288 = smul.u32 4, %s18
          %s289 = smul.addr %s288, 4
          %s290 = scalar_lea.vmem %s0, %s289
          // Predicated region
          $region53: #{tpu_custom_call.1} parent=51 // pred_check
            _
          $region54: #{tpu_custom_call.1} parent=51 // pred_check_branch
            %292 = sbr.rel (0) target = $region56
          $region55: #{tpu_custom_call.1} parent=51 // pred_region
            // Predicated region
            $region57: #{tpu_custom_call.1} parent=55 // pred_check
              _
            $region58: #{tpu_custom_call.1} parent=55 // pred_check_branch
              %294 = sbr.rel (0) target = $region60
            $region59: #{tpu_custom_call.1} parent=55 // pred_region
              loop: start=0, step=1, limit=1
              $region61: #{tpu_custom_call.1} parent=59 // loop_pre_header
                _
              $region62: #{tpu_custom_call.1} parent=59 // loop_header
                %s296 = sphi 0, %s300
                %p297 = scmp.ge.s32.totalorder %s296, 1
                %s301 = sphi %s290, %s290
                %s302 = sphi %s287, %s287
              $region63: #{tpu_custom_call.1} parent=59 // loop_header_branch
                %299 = sbr.rel (%p297) target = $region67
              $region64: #{tpu_custom_call.1} parent=59 // loop_body
                %v303 = vld [vmem:[%s301] sm:$0xff]
                %304 = vst [vmem:[%s302] sm:$0xff] %v303
                %v305 = vld [vmem:[%s301 + $0x8] sm:$0xff]
                %306 = vst [vmem:[%s302 + $0x8] sm:$0xff] %v305
                %v307 = vld [vmem:[%s301 + $0x20] sm:$0xff]
                %308 = vst [vmem:[%s302 + $0x10] sm:$0xff] %v307
                %v309 = vld [vmem:[%s301 + $0x28] sm:$0xff]
                %310 = vst [vmem:[%s302 + $0x18] sm:$0xff] %v309
              $region65: #{tpu_custom_call.1} parent=59 // loop_footer
                %s300 = sadd.s32 1, %s296
              $region66: #{tpu_custom_call.1} parent=59 // loop_footer_branch
                %295 = sbr.rel target = $region62
              $region67: #{tpu_custom_call.1} parent=59 // loop_exit
                _
            $region60: #{tpu_custom_call.1} parent=55 // pred_fallthru
              _
            // Predicated region
            $region68: #{tpu_custom_call.1} parent=55 // pred_check
              _
            $region69: #{tpu_custom_call.1} parent=55 // pred_check_branch
              %312 = sbr.rel target = $region71
            $region70: #{tpu_custom_call.1} parent=55 // pred_region
              _
            $region71: #{tpu_custom_call.1} parent=55 // pred_fallthru
              _
          $region56: #{tpu_custom_call.1} parent=51 // pred_fallthru
            _
          %313 = vnop
        $region52: #{tpu_custom_call.1} parent=47 // pred_fallthru
          _
      $region48: #{tpu_custom_call.1} parent=5 // pred_fallthru
        _
      %p314 = scmp.le.s32.totalorder 1, %s18
      %p315 = scmp.lt.s32.totalorder %s18, 3
      %p316 = pnand %p314, %p315
      %p317 = pneg %p316
      // Predicated region
      $region72: #{tpu_custom_call.1} parent=5 // pred_check
        _
      $region73: #{tpu_custom_call.1} parent=5 // pred_check_branch
        %319 = sbr.rel (%p316) target = $region75
      $region74: #{tpu_custom_call.1} parent=5 // pred_region
        %s320 = ssub.s32 %s18, 1
        %s321 = sand.u32 %s31, 1
        %s322 = sand.u32 %s31, 1
        %s323 = smul.addr %s322, 32
        %s324 = scalar_lea.vmem [#allocation2], %s323
        // Predicated region
        $region76: #{tpu_custom_call.1} parent=74 // pred_check
          %p325 = pneg %p44
        $region77: #{tpu_custom_call.1} parent=74 // pred_check_branch
          %327 = sbr.rel (%p325) target = $region79
        $region78: #{tpu_custom_call.1} parent=74 // pred_region
          _
        $region79: #{tpu_custom_call.1} parent=74 // pred_fallthru
          _
        %s328 = sand.u32 %s31, 1
        %s329 = sand.u32 %s31, 1
        %s330 = smul.addr %s329, 32
        %s331 = scalar_lea.vmem [#allocation2], %s330
        %p332 = pneg %p44
        %p333 = pneg %p41
        %p334 = pneg %p65
        %p335 = pneg %p62
        %p336 = pneg %p86
        %p337 = pneg %p83
        %p338 = pneg %p107
        %p339 = pneg %p104
        %p340 = pneg %p128
        %p341 = pneg %p125
        %p342 = pneg %p149
        %p343 = pneg %p146
        %p344 = pneg %p170
        %p345 = pneg %p167
        %p346 = pneg %p191
        %p347 = pneg %p188
        %p348 = pneg %p212
        %p349 = pneg %p209
        %p350 = pneg %p238
        %p351 = pneg %p235
        %s352 = sand.u32 %s225, 1
        %s353 = scalar_lea.sflag [#allocation4], %s352
        %s354 = sand.u32 %s225, 1
        %s355 = smul.addr %s354, 64
        %s356 = scalar_lea.vmem [#allocation3], %s355
        %s357 = smul.u32 4, %s23
        %s358 = smul.u32 4, %s23
        %v360 = vld [vmem:[%s324] sm:$0xff]
        %v361 = vld [vmem:[%s324 + $0x8] sm:$0xff]
        %v362 = vld [vmem:[%s324 + $0x10] sm:$0xff]
        %v363 = vld [vmem:[%s324 + $0x18] sm:$0xff]
        %v364 = vld [vmem:[%s1] sm:$0xf]
        %v365 = vld [vmem:[%s1 + $0x4] sm:$0xf]
        %v366 = vld [vmem:[%s2] sm:$0xff]
        %v367 = vld [vmem:[%s2 + $0x8] sm:$0xff]
        %369 = vset.pattern.permute.xlu0 0
        %370 = vperm.xlu0 %369, %v366
        %v371 = vpop.permute.xlu0 %370
        %374 = vset.pattern.permute.xlu0 0
        %375 = vperm.xlu0 %374, %v367
        %v376 = vpop.permute.xlu0 %375
        %v380 = vunpack.c.l.b16 %v364
        %v381 = vunpack.c.l.b16 %v365
        %v382 = vpack.c.b16 %v381, %v380
        %v387 = vunpack.c.l.b16 %v360
        %v388 = vunpack.c.h.b16 %v360
        %v389 = vunpack.c.l.b16 %v361
        %v390 = vunpack.c.h.b16 %v361
        %v391 = vunpack.c.l.b16 %v362
        %v392 = vunpack.c.h.b16 %v362
        %v393 = vunpack.c.l.b16 %v363
        %v394 = vunpack.c.h.b16 %v363
        %v395 = vpack.c.b16 %v391, %v387
        %v396 = vpack.c.b16 %v392, %v388
        %v397 = vpack.c.b16 %v393, %v389
        %v398 = vpack.c.b16 %v394, %v390
        %vm403 = vcmask 130048
        %v405 = vsel %vm403, %v382, 0
        %407 = vmatpush.bf16.msra.mxu0 0
        %408 = vmatpush.bf16.msra.mxu0 0
        %409 = vmatpush.bf16.msra.mxu0 0
        %410 = vmatpush.bf16.msra.mxu0 0
        %411 = vmatpush.bf16.msra.mxu0 0
        %412 = vmatpush.bf16.msra.mxu0 0
        %413 = vmatpush.bf16.msra.mxu0 0
        %414 = vmatpush.bf16.msra.mxu0 %v395
        %415 = vmatmul.bf16.gmra.mxu0 %v405
        %v416 = vpop.f32.mrf.mxu0
        %v417 = vadd.f32 %v371, %v416
        %v418 = vpop.f32.mrf.mxu0
        %v419 = vadd.f32 %v376, %v418
        %420 = vdwg.mxu0
        %421 = vmatpush.bf16.msra.mxu0 0
        %422 = vmatpush.bf16.msra.mxu0 0
        %423 = vmatpush.bf16.msra.mxu0 0
        %424 = vmatpush.bf16.msra.mxu0 0
        %425 = vmatpush.bf16.msra.mxu0 0
        %426 = vmatpush.bf16.msra.mxu0 0
        %427 = vmatpush.bf16.msra.mxu0 0
        %428 = vmatpush.bf16.msra.mxu0 %v396
        %429 = vmatmul.bf16.gmra.mxu0 %v405
        %v430 = vpop.f32.mrf.mxu0
        %v431 = vadd.f32 %v371, %v430
        %v432 = vpop.f32.mrf.mxu0
        %v433 = vadd.f32 %v376, %v432
        %434 = vdwg.mxu0
        %435 = vmatpush.bf16.msra.mxu0 0
        %436 = vmatpush.bf16.msra.mxu0 0
        %437 = vmatpush.bf16.msra.mxu0 0
        %438 = vmatpush.bf16.msra.mxu0 0
        %439 = vmatpush.bf16.msra.mxu0 0
        %440 = vmatpush.bf16.msra.mxu0 0
        %441 = vmatpush.bf16.msra.mxu0 0
        %442 = vmatpush.bf16.msra.mxu0 %v397
        %443 = vmatmul.bf16.gmra.mxu0 %v405
        %v444 = vpop.f32.mrf.mxu0
        %v445 = vadd.f32 %v371, %v444
        %v446 = vpop.f32.mrf.mxu0
        %v447 = vadd.f32 %v376, %v446
        %448 = vdwg.mxu0
        %449 = vmatpush.bf16.msra.mxu0 0
        %450 = vmatpush.bf16.msra.mxu0 0
        %451 = vmatpush.bf16.msra.mxu0 0
        %452 = vmatpush.bf16.msra.mxu0 0
        %453 = vmatpush.bf16.msra.mxu0 0
        %454 = vmatpush.bf16.msra.mxu0 0
        %455 = vmatpush.bf16.msra.mxu0 0
        %456 = vmatpush.bf16.msra.mxu0 %v398
        %457 = vmatmul.bf16.gmra.mxu0 %v405
        %v458 = vpop.f32.mrf.mxu0
        %v459 = vadd.f32 %v371, %v458
        %v460 = vpop.f32.mrf.mxu0
        %v461 = vadd.f32 %v376, %v460
        %462 = vdwg.mxu0
        %v463 = vmax.f32 %v417, 0.0
        %v464 = vmax.f32 %v431, 0.0
        %v465 = vmax.f32 %v445, 0.0
        %v466 = vmax.f32 %v459, 0.0
        %v467 = vmax.f32 %v419, 0.0
        %v468 = vmax.f32 %v433, 0.0
        %v469 = vmax.f32 %v447, 0.0
        %v470 = vmax.f32 %v461, 0.0
        %v471 = vpack.c.bf16 %v467, %v463
        %v472 = vpack.c.bf16 %v468, %v464
        %v473 = vpack.c.bf16 %v469, %v465
        %v474 = vpack.c.bf16 %v470, %v466
        %v475 = vld [vmem:[%s3] sm:$0xf]
        %v476 = vld [vmem:[%s3 + $0x4] sm:$0xf]
        %v477 = vld [vmem:[%s3 + $0x8] sm:$0xf]
        %v478 = vld [vmem:[%s3 + $0xc] sm:$0xf]
        %v479 = vld [vmem:[%s4] sm:$0xff]
        %v480 = vld [vmem:[%s4 + $0x8] sm:$0xff]
        %v481 = vld [vmem:[%s4 + $0x10] sm:$0xff]
        %v482 = vld [vmem:[%s4 + $0x18] sm:$0xff]
        %484 = vset.pattern.permute.xlu0 0
        %485 = vperm.xlu0 %484, %v479
        %v486 = vpop.permute.xlu0 %485
        %489 = vset.pattern.permute.xlu0 0
        %490 = vperm.xlu0 %489, %v480
        %v491 = vpop.permute.xlu0 %490
        %494 = vset.pattern.permute.xlu0 0
        %495 = vperm.xlu0 %494, %v481
        %v496 = vpop.permute.xlu0 %495
        %499 = vset.pattern.permute.xlu0 0
        %500 = vperm.xlu0 %499, %v482
        %v501 = vpop.permute.xlu0 %500
        %v507 = vunpack.c.l.b16 %v475
        %v508 = vunpack.c.l.b16 %v476
        %v509 = vunpack.c.l.b16 %v477
        %v510 = vunpack.c.l.b16 %v478
        %v511 = vpack.c.b16 %v508, %v507
        %v512 = vpack.c.b16 %v510, %v509
        %v514 = vsel %vm403, %v511, 0
        %v517 = vsel %vm403, %v512, 0
        %519 = vmatpush.bf16.msra.mxu0 0
        %520 = vmatpush.bf16.msra.mxu0 0
        %521 = vmatpush.bf16.msra.mxu0 0
        %522 = vmatpush.bf16.msra.mxu0 0
        %523 = vmatpush.bf16.msra.mxu0 0
        %524 = vmatpush.bf16.msra.mxu0 0
        %525 = vmatpush.bf16.msra.mxu0 0
        %526 = vmatpush.bf16.msra.mxu0 %v471
        %527 = vmatmul.bf16.gmra.mxu0 %v514
        %v528 = vpop.f32.mrf.mxu0
        %v529 = vadd.f32 %v486, %v528
        %v530 = vpop.f32.mrf.mxu0
        %v531 = vadd.f32 %v491, %v530
        %532 = vmatmul.bf16.gmra.mxu0 %v517
        %v533 = vpop.f32.mrf.mxu0
        %v534 = vadd.f32 %v496, %v533
        %v535 = vpop.f32.mrf.mxu0
        %v536 = vadd.f32 %v501, %v535
        %537 = vdwg.mxu0
        %538 = vmatpush.bf16.msra.mxu0 0
        %539 = vmatpush.bf16.msra.mxu0 0
        %540 = vmatpush.bf16.msra.mxu0 0
        %541 = vmatpush.bf16.msra.mxu0 0
        %542 = vmatpush.bf16.msra.mxu0 0
        %543 = vmatpush.bf16.msra.mxu0 0
        %544 = vmatpush.bf16.msra.mxu0 0
        %545 = vmatpush.bf16.msra.mxu0 %v472
        %546 = vmatmul.bf16.gmra.mxu0 %v514
        %v547 = vpop.f32.mrf.mxu0
        %v548 = vadd.f32 %v486, %v547
        %v549 = vpop.f32.mrf.mxu0
        %v550 = vadd.f32 %v491, %v549
        %551 = vmatmul.bf16.gmra.mxu0 %v517
        %v552 = vpop.f32.mrf.mxu0
        %v553 = vadd.f32 %v496, %v552
        %v554 = vpop.f32.mrf.mxu0
        %v555 = vadd.f32 %v501, %v554
        %556 = vdwg.mxu0
        %557 = vmatpush.bf16.msra.mxu0 0
        %558 = vmatpush.bf16.msra.mxu0 0
        %559 = vmatpush.bf16.msra.mxu0 0
        %560 = vmatpush.bf16.msra.mxu0 0
        %561 = vmatpush.bf16.msra.mxu0 0
        %562 = vmatpush.bf16.msra.mxu0 0
        %563 = vmatpush.bf16.msra.mxu0 0
        %564 = vmatpush.bf16.msra.mxu0 %v473
        %565 = vmatmul.bf16.gmra.mxu0 %v514
        %v566 = vpop.f32.mrf.mxu0
        %v567 = vadd.f32 %v486, %v566
        %v568 = vpop.f32.mrf.mxu0
        %v569 = vadd.f32 %v491, %v568
        %570 = vmatmul.bf16.gmra.mxu0 %v517
        %v571 = vpop.f32.mrf.mxu0
        %v572 = vadd.f32 %v496, %v571
        %v573 = vpop.f32.mrf.mxu0
        %v574 = vadd.f32 %v501, %v573
        %575 = vdwg.mxu0
        %576 = vmatpush.bf16.msra.mxu0 0
        %577 = vmatpush.bf16.msra.mxu0 0
        %578 = vmatpush.bf16.msra.mxu0 0
        %579 = vmatpush.bf16.msra.mxu0 0
        %580 = vmatpush.bf16.msra.mxu0 0
        %581 = vmatpush.bf16.msra.mxu0 0
        %582 = vmatpush.bf16.msra.mxu0 0
        %583 = vmatpush.bf16.msra.mxu0 %v474
        %584 = vmatmul.bf16.gmra.mxu0 %v514
        %v585 = vpop.f32.mrf.mxu0
        %v586 = vadd.f32 %v486, %v585
        %v587 = vpop.f32.mrf.mxu0
        %v588 = vadd.f32 %v491, %v587
        %589 = vmatmul.bf16.gmra.mxu0 %v517
        %v590 = vpop.f32.mrf.mxu0
        %v591 = vadd.f32 %v496, %v590
        %v592 = vpop.f32.mrf.mxu0
        %v593 = vadd.f32 %v501, %v592
        %594 = vdwg.mxu0
        %v595 = vmax.f32 %v529, 0.0
        %v596 = vmax.f32 %v548, 0.0
        %v597 = vmax.f32 %v567, 0.0
        %v598 = vmax.f32 %v586, 0.0
        %v599 = vmax.f32 %v531, 0.0
        %v600 = vmax.f32 %v550, 0.0
        %v601 = vmax.f32 %v569, 0.0
        %v602 = vmax.f32 %v588, 0.0
        %v603 = vmax.f32 %v534, 0.0
        %v604 = vmax.f32 %v553, 0.0
        %v605 = vmax.f32 %v572, 0.0
        %v606 = vmax.f32 %v591, 0.0
        %v607 = vmax.f32 %v536, 0.0
        %v608 = vmax.f32 %v555, 0.0
        %v609 = vmax.f32 %v574, 0.0
        %v610 = vmax.f32 %v593, 0.0
        %v611 = vpack.c.bf16 %v599, %v595
        %v612 = vpack.c.bf16 %v600, %v596
        %v613 = vpack.c.bf16 %v601, %v597
        %v614 = vpack.c.bf16 %v602, %v598
        %v615 = vpack.c.bf16 %v607, %v603
        %v616 = vpack.c.bf16 %v608, %v604
        %v617 = vpack.c.bf16 %v609, %v605
        %v618 = vpack.c.bf16 %v610, %v606
        %v619 = vld [vmem:[%s5] sm:$0xf]
        %v620 = vld [vmem:[%s5 + $0x4] sm:$0xf]
        %v621 = vld [vmem:[%s5 + $0x8] sm:$0xf]
        %v622 = vld [vmem:[%s5 + $0xc] sm:$0xf]
        %v623 = vld [vmem:[%s6] sm:$0xff]
        %v624 = vld [vmem:[%s6 + $0x8] sm:$0xff]
        %v625 = vld [vmem:[%s6 + $0x10] sm:$0xff]
        %v626 = vld [vmem:[%s6 + $0x18] sm:$0xff]
        %628 = vset.pattern.permute.xlu0 0
        %629 = vperm.xlu0 %628, %v623
        %v630 = vpop.permute.xlu0 %629
        %633 = vset.pattern.permute.xlu0 0
        %634 = vperm.xlu0 %633, %v624
        %v635 = vpop.permute.xlu0 %634
        %638 = vset.pattern.permute.xlu0 0
        %639 = vperm.xlu0 %638, %v625
        %v640 = vpop.permute.xlu0 %639
        %643 = vset.pattern.permute.xlu0 0
        %644 = vperm.xlu0 %643, %v626
        %v645 = vpop.permute.xlu0 %644
        %v651 = vunpack.c.l.b16 %v619
        %v652 = vunpack.c.l.b16 %v620
        %v653 = vunpack.c.l.b16 %v621
        %v654 = vunpack.c.l.b16 %v622
        %v655 = vpack.c.b16 %v652, %v651
        %v656 = vpack.c.b16 %v654, %v653
        %vm657 = vcmask 261120
        %v659 = vsel %vm657, %v655, 0
        %v662 = vsel %vm657, %v656, 0
        %664 = vmatpush.bf16.msra.mxu0 0
        %665 = vmatpush.bf16.msra.mxu0 0
        %666 = vmatpush.bf16.msra.mxu0 0
        %667 = vmatpush.bf16.msra.mxu0 0
        %668 = vmatpush.bf16.msra.mxu0 0
        %669 = vmatpush.bf16.msra.mxu0 0
        %670 = vmatpush.bf16.msra.mxu0 %v615
        %671 = vmatpush.bf16.msra.mxu0 %v611
        %672 = vmatmul.bf16.gmra.mxu0 %v659
        %v673 = vpop.f32.mrf.mxu0
        %v674 = vadd.f32 %v630, %v673
        %v675 = vpop.f32.mrf.mxu0
        %v676 = vadd.f32 %v635, %v675
        %677 = vmatmul.bf16.gmra.mxu0 %v662
        %v678 = vpop.f32.mrf.mxu0
        %v679 = vadd.f32 %v640, %v678
        %v680 = vpop.f32.mrf.mxu0
        %v681 = vadd.f32 %v645, %v680
        %682 = vdwg.mxu0
        %683 = vmatpush.bf16.msra.mxu0 0
        %684 = vmatpush.bf16.msra.mxu0 0
        %685 = vmatpush.bf16.msra.mxu0 0
        %686 = vmatpush.bf16.msra.mxu0 0
        %687 = vmatpush.bf16.msra.mxu0 0
        %688 = vmatpush.bf16.msra.mxu0 0
        %689 = vmatpush.bf16.msra.mxu0 %v616
        %690 = vmatpush.bf16.msra.mxu0 %v612
        %691 = vmatmul.bf16.gmra.mxu0 %v659
        %v692 = vpop.f32.mrf.mxu0
        %v693 = vadd.f32 %v630, %v692
        %v694 = vpop.f32.mrf.mxu0
        %v695 = vadd.f32 %v635, %v694
        %696 = vmatmul.bf16.gmra.mxu0 %v662
        %v697 = vpop.f32.mrf.mxu0
        %v698 = vadd.f32 %v640, %v697
        %v699 = vpop.f32.mrf.mxu0
        %v700 = vadd.f32 %v645, %v699
        %701 = vdwg.mxu0
        %702 = vmatpush.bf16.msra.mxu0 0
        %703 = vmatpush.bf16.msra.mxu0 0
        %704 = vmatpush.bf16.msra.mxu0 0
        %705 = vmatpush.bf16.msra.mxu0 0
        %706 = vmatpush.bf16.msra.mxu0 0
        %707 = vmatpush.bf16.msra.mxu0 0
        %708 = vmatpush.bf16.msra.mxu0 %v617
        %709 = vmatpush.bf16.msra.mxu0 %v613
        %710 = vmatmul.bf16.gmra.mxu0 %v659
        %v711 = vpop.f32.mrf.mxu0
        %v712 = vadd.f32 %v630, %v711
        %v713 = vpop.f32.mrf.mxu0
        %v714 = vadd.f32 %v635, %v713
        %715 = vmatmul.bf16.gmra.mxu0 %v662
        %v716 = vpop.f32.mrf.mxu0
        %v717 = vadd.f32 %v640, %v716
        %v718 = vpop.f32.mrf.mxu0
        %v719 = vadd.f32 %v645, %v718
        %720 = vdwg.mxu0
        %721 = vmatpush.bf16.msra.mxu0 0
        %722 = vmatpush.bf16.msra.mxu0 0
        %723 = vmatpush.bf16.msra.mxu0 0
        %724 = vmatpush.bf16.msra.mxu0 0
        %725 = vmatpush.bf16.msra.mxu0 0
        %726 = vmatpush.bf16.msra.mxu0 0
        %727 = vmatpush.bf16.msra.mxu0 %v618
        %728 = vmatpush.bf16.msra.mxu0 %v614
        %729 = vmatmul.bf16.gmra.mxu0 %v659
        %v730 = vpop.f32.mrf.mxu0
        %v731 = vadd.f32 %v630, %v730
        %v732 = vpop.f32.mrf.mxu0
        %v733 = vadd.f32 %v635, %v732
        %734 = vmatmul.bf16.gmra.mxu0 %v662
        %v735 = vpop.f32.mrf.mxu0
        %v736 = vadd.f32 %v640, %v735
        %v737 = vpop.f32.mrf.mxu0
        %v738 = vadd.f32 %v645, %v737
        %739 = vdwg.mxu0
        %v740 = vmax.f32 %v674, 0.0
        %v741 = vmax.f32 %v693, 0.0
        %v742 = vmax.f32 %v712, 0.0
        %v743 = vmax.f32 %v731, 0.0
        %v744 = vmax.f32 %v676, 0.0
        %v745 = vmax.f32 %v695, 0.0
        %v746 = vmax.f32 %v714, 0.0
        %v747 = vmax.f32 %v733, 0.0
        %v748 = vmax.f32 %v679, 0.0
        %v749 = vmax.f32 %v698, 0.0
        %v750 = vmax.f32 %v717, 0.0
        %v751 = vmax.f32 %v736, 0.0
        %v752 = vmax.f32 %v681, 0.0
        %v753 = vmax.f32 %v700, 0.0
        %v754 = vmax.f32 %v719, 0.0
        %v755 = vmax.f32 %v738, 0.0
        %v756 = vpack.c.bf16 %v744, %v740
        %v757 = vpack.c.bf16 %v745, %v741
        %v758 = vpack.c.bf16 %v746, %v742
        %v759 = vpack.c.bf16 %v747, %v743
        %v760 = vpack.c.bf16 %v752, %v748
        %v761 = vpack.c.bf16 %v753, %v749
        %v762 = vpack.c.bf16 %v754, %v750
        %v763 = vpack.c.bf16 %v755, %v751
        %v764 = vld [vmem:[%s7] sm:$0xf]
        %v765 = vld [vmem:[%s7 + $0x4] sm:$0xf]
        %v766 = vld [vmem:[%s8] sm:$0xff]
        %v767 = vld [vmem:[%s8 + $0x8] sm:$0xff]
        %769 = vset.pattern.permute.xlu0 0
        %770 = vperm.xlu0 %769, %v766
        %v771 = vpop.permute.xlu0 %770
        %774 = vset.pattern.permute.xlu0 0
        %775 = vperm.xlu0 %774, %v767
        %v776 = vpop.permute.xlu0 %775
        %v780 = vunpack.c.l.b16 %v764
        %v781 = vunpack.c.l.b16 %v765
        %v782 = vpack.c.b16 %v781, %v780
        %v784 = vsel %vm657, %v782, 0
        %786 = vmatpush.bf16.msra.mxu0 0
        %787 = vmatpush.bf16.msra.mxu0 0
        %788 = vmatpush.bf16.msra.mxu0 0
        %789 = vmatpush.bf16.msra.mxu0 0
        %790 = vmatpush.bf16.msra.mxu0 0
        %791 = vmatpush.bf16.msra.mxu0 0
        %792 = vmatpush.bf16.msra.mxu0 %v760
        %793 = vmatpush.bf16.msra.mxu0 %v756
        %794 = vmatmul.bf16.gmra.mxu0 %v784
        %v795 = vpop.f32.mrf.mxu0
        %v796 = vadd.f32 %v771, %v795
        %v797 = vpop.f32.mrf.mxu0
        %v798 = vadd.f32 %v776, %v797
        %799 = vdwg.mxu0
        %800 = vmatpush.bf16.msra.mxu0 0
        %801 = vmatpush.bf16.msra.mxu0 0
        %802 = vmatpush.bf16.msra.mxu0 0
        %803 = vmatpush.bf16.msra.mxu0 0
        %804 = vmatpush.bf16.msra.mxu0 0
        %805 = vmatpush.bf16.msra.mxu0 0
        %806 = vmatpush.bf16.msra.mxu0 %v761
        %807 = vmatpush.bf16.msra.mxu0 %v757
        %808 = vmatmul.bf16.gmra.mxu0 %v784
        %v809 = vpop.f32.mrf.mxu0
        %v810 = vadd.f32 %v771, %v809
        %v811 = vpop.f32.mrf.mxu0
        %v812 = vadd.f32 %v776, %v811
        %813 = vdwg.mxu0
        %814 = vmatpush.bf16.msra.mxu0 0
        %815 = vmatpush.bf16.msra.mxu0 0
        %816 = vmatpush.bf16.msra.mxu0 0
        %817 = vmatpush.bf16.msra.mxu0 0
        %818 = vmatpush.bf16.msra.mxu0 0
        %819 = vmatpush.bf16.msra.mxu0 0
        %820 = vmatpush.bf16.msra.mxu0 %v762
        %821 = vmatpush.bf16.msra.mxu0 %v758
        %822 = vmatmul.bf16.gmra.mxu0 %v784
        %v823 = vpop.f32.mrf.mxu0
        %v824 = vadd.f32 %v771, %v823
        %v825 = vpop.f32.mrf.mxu0
        %v826 = vadd.f32 %v776, %v825
        %827 = vdwg.mxu0
        %828 = vmatpush.bf16.msra.mxu0 0
        %829 = vmatpush.bf16.msra.mxu0 0
        %830 = vmatpush.bf16.msra.mxu0 0
        %831 = vmatpush.bf16.msra.mxu0 0
        %832 = vmatpush.bf16.msra.mxu0 0
        %833 = vmatpush.bf16.msra.mxu0 0
        %834 = vmatpush.bf16.msra.mxu0 %v763
        %835 = vmatpush.bf16.msra.mxu0 %v759
        %836 = vmatmul.bf16.gmra.mxu0 %v784
        %v837 = vpop.f32.mrf.mxu0
        %v838 = vadd.f32 %v771, %v837
        %v839 = vpop.f32.mrf.mxu0
        %v840 = vadd.f32 %v776, %v839
        %841 = vdwg.mxu0
        %v842 = vmax.f32 %v796, 0.0
        %v843 = vmax.f32 %v810, 0.0
        %v844 = vmax.f32 %v824, 0.0
        %v845 = vmax.f32 %v838, 0.0
        %v846 = vmax.f32 %v798, 0.0
        %v847 = vmax.f32 %v812, 0.0
        %v848 = vmax.f32 %v826, 0.0
        %v849 = vmax.f32 %v840, 0.0
        %850 = vst [vmem:[%s356] sm:$0xff] %v842
        %851 = vst [vmem:[%s356 + $0x8] sm:$0xff] %v843
        %852 = vst [vmem:[%s356 + $0x10] sm:$0xff] %v844
        %853 = vst [vmem:[%s356 + $0x18] sm:$0xff] %v845
        %854 = vst [vmem:[%s356 + $0x20] sm:$0xff] %v846
        %855 = vst [vmem:[%s356 + $0x28] sm:$0xff] %v847
        %856 = vst [vmem:[%s356 + $0x30] sm:$0xff] %v848
        %857 = vst [vmem:[%s356 + $0x38] sm:$0xff] %v849
        %s858 = sand.u32 %s225, 1
        %s859 = scalar_lea.sflag [#allocation4], %s858
        %s860 = sand.u32 %s225, 1
        %s861 = smul.addr %s860, 64
        %s862 = scalar_lea.vmem [#allocation3], %s861
        // Predicated region
        $region80: #{tpu_custom_call.1} parent=74 // pred_check
          %p863 = pneg %p235
        $region81: #{tpu_custom_call.1} parent=74 // pred_check_branch
          %865 = sbr.rel (%p863) target = $region83
        $region82: #{tpu_custom_call.1} parent=74 // pred_region
          %s866 = smul.u32 4, %s23
          %868 = vsyncadd %s859, 0
          %s869 = smul.addr %s866, 8
          %s870 = scalar_lea.hbm %s9, %s869
          %s871 = sshll.u32 %s862, 4
          %s872 = int_to_ptr.vmem [resolvable:$true] %s871
          %s873 = sshll.u32 %s870, 4
          %s874 = int_to_ptr.hbm [resolvable:$true] %s873
          %879 = dma.vmem_to_hbm [thread:$0]  %s872, 1024, %s874, %s859, 512, 1024, 32
        $region83: #{tpu_custom_call.1} parent=74 // pred_fallthru
          _
      $region75: #{tpu_custom_call.1} parent=5 // pred_fallthru
        _
      %p880 = scmp.le.s32.totalorder 2, %s18
      // Predicated region
      $region84: #{tpu_custom_call.1} parent=5 // pred_check
        %p881 = pneg %p880
      $region85: #{tpu_custom_call.1} parent=5 // pred_check_branch
        %883 = sbr.rel (%p881) target = $region87
      $region86: #{tpu_custom_call.1} parent=5 // pred_region
        %s884 = ssub.s32 %s18, 2
        // Predicated region
        $region88: #{tpu_custom_call.1} parent=86 // pred_check
          %p885 = pneg %p241
        $region89: #{tpu_custom_call.1} parent=86 // pred_check_branch
          %887 = sbr.rel (%p885) target = $region91
        $region90: #{tpu_custom_call.1} parent=86 // pred_region
          %s888 = sand.u32 %s226, 1
          %s889 = scalar_lea.sflag [#allocation4], %s888
          %s890 = sand.u32 %s226, 1
          %s891 = smul.addr %s890, 64
          %s892 = scalar_lea.vmem [#allocation3], %s891
          %894 = dma.done %s889, 1024
        $region91: #{tpu_custom_call.1} parent=86 // pred_fallthru
          _
      $region87: #{tpu_custom_call.1} parent=5 // pred_fallthru
        _
    $region6: #{tpu_custom_call.1} parent=1 // loop_footer
      %s22 = sadd.s32 1, %s18
    $region7: #{tpu_custom_call.1} parent=1 // loop_footer_branch
      %17 = sbr.rel target = $region3
    $region8: #{tpu_custom_call.1} parent=1 // loop_exit
      _
    %895 = vsyncpa [#allocation4], 1
    %s896 = scalar_lea.sflag [#allocation4], 1
    %897 = vsyncpa %s896, 1

</llo_original>
